<compile_context>
chip_gen: v7x
topology: tpu7x:2x2x1
jax: 0.10.0
libtpu: 0.0.40
codegen_flags: <defaults>
</compile_context>

<pallas_src>
import functools

import jax
import jax.numpy as jnp
from jax.experimental import pallas as pl
from jax.experimental.pallas import tpu as pltpu

LN_EPS = 1e-5


def _round_up(x, m):
    return ((x + m - 1) // m) * m


def _patch_embed_kernel(x_ref, w_ref, b_ref, g_ref, bt_ref, o_ref):
    # x_ref : (K, tile)   patch columns (matmul dtype), lane-dense
    # w_ref : (E, K)      projection weight (matmul dtype), resident
    # b_ref : (E, 1) f32  conv bias
    # g_ref : (E, 1) f32  LayerNorm gamma
    # bt_ref: (E, 1) f32  LayerNorm beta
    # o_ref : (E, tile)   output block (lane-dense stores)
    acc = jnp.dot(w_ref[...], x_ref[...], preferred_element_type=jnp.float32)
    acc = acc + b_ref[...]

    e = acc.shape[0]
    inv_e = 1.0 / e
    # LayerNorm over the embedding (sublane) axis; E is exact, no masking.
    mean = jnp.sum(acc, axis=0, keepdims=True) * inv_e
    centered = acc - mean
    var = jnp.sum(centered * centered, axis=0, keepdims=True) * inv_e
    inv = jax.lax.rsqrt(var + LN_EPS)
    o_ref[...] = (centered * inv * g_ref[...] + bt_ref[...]).astype(o_ref.dtype)


def patch_embed_forward(x, conv_w, conv_b, ln_gamma, ln_beta, patch_size,
                        *, tile_n=4096, matmul_dtype=jnp.bfloat16):
    """x: (B, C, T, H, W); conv_w: (E, C, 1, p, p); conv_b/ln_*: (E,)."""
    B, C, T, H, W = x.shape
    p = patch_size
    Hp, Wp = H // p, W // p
    E = conv_w.shape[0]
    K = C * p * p
    Npb = T * Hp * Wp          # tokens per batch element

    in_bytes = jnp.dtype(matmul_dtype).itemsize
    out_bytes = jnp.dtype(x.dtype).itemsize

    def vmem_est(t):
        lane = lambda n: max(_round_up(n, 128), 128)
        sub = lambda n: max(_round_up(n, 8), 8)
        x_blk = sub(K) * lane(t) * in_bytes
        o_blk = sub(E) * lane(t) * out_bytes
        resident = sub(E) * lane(K) * in_bytes + 3 * sub(E) * 128 * 4
        return 2 * (x_blk + o_blk) + 2 * resident

    # --- token tile: it is the lane axis of both loads and stores, so keep it
    # a multiple of 128 (or the full extent).  Budget against v7x's 64 MiB/TC.
    VMEM_BUDGET = 48 * 1024 * 1024
    tile_target = max(128, (tile_n // 128) * 128)
    while tile_target > 128 and vmem_est(tile_target) > VMEM_BUDGET:
        tile_target = max(128, (tile_target // 2 // 128) * 128)
    # Megacore (v7x has 2 TCs): aim for >= ~8 total grid steps when there is
    # enough work to split.
    if B * Npb >= 8 * 128:
        tile_target = min(tile_target,
                          max(128, _round_up(pl.cdiv(B * Npb, 8), 128)))

    if Npb <= tile_target:
        tile = Npb                              # full extent -> legal block dim
    else:
        tile = None
        cand = tile_target
        while cand >= 128:                      # prefer a divisor of Npb: no
            if Npb % cand == 0:                 # jnp.pad -> patch-extract can
                tile = cand                     # fuse into the pallas operand
                break
            cand -= 128
        if tile is None:                        # fallback: minimize padding
            steps = pl.cdiv(Npb, tile_target)
            tile = max(128, _round_up(pl.cdiv(Npb, steps), 128))
    Npb_pad = _round_up(Npb, tile)

    # Patch extraction: (B,C,T,H,W) -> (B, K, Npb), K ordered (c, kh, kw) to
    # match the conv weight flattening (E, C, 1, p, p) -> (E, K).  Token index
    # ordered (t, hp, wp) so the kernel output reshapes directly to
    # (B, E, T, Hp, Wp) with no transpose.
    x = x[:, :, :, :Hp * p, :Wp * p]
    xr = x.reshape(B, C, T, Hp, p, Wp, p)
    xr = jnp.transpose(xr, (0, 1, 4, 6, 2, 3, 5))     # (B, C, kh, kw, T, Hp, Wp)
    patches = xr.reshape(B, K, Npb).astype(matmul_dtype)
    if Npb_pad != Npb:
        patches = jnp.pad(patches, ((0, 0), (0, 0), (0, Npb_pad - Npb)))

    w2 = conv_w.reshape(E, K).astype(matmul_dtype)     # (E, K), no padding
    b2 = conv_b.reshape(E, 1).astype(jnp.float32)
    g2 = ln_gamma.reshape(E, 1).astype(jnp.float32)
    be2 = ln_beta.reshape(E, 1).astype(jnp.float32)

    cost = pl.CostEstimate(
        flops=2 * B * Npb_pad * K * E,
        transcendentals=0,
        bytes_accessed=(B * Npb_pad * K * in_bytes + E * K * in_bytes
                        + 3 * E * 4 + B * E * Npb_pad * out_bytes),
    )

    grid = (B, Npb_pad // tile)
    out = pl.pallas_call(
        _patch_embed_kernel,
        out_shape=jax.ShapeDtypeStruct((B, E, Npb_pad), x.dtype),
        grid_spec=pltpu.PrefetchScalarGridSpec(
            num_scalar_prefetch=0,
            grid=grid,
            in_specs=[
                pl.BlockSpec((None, K, tile), lambda b, i: (b, 0, i)),
                pl.BlockSpec((E, K), lambda b, i: (0, 0)),
                pl.BlockSpec((E, 1), lambda b, i: (0, 0)),
                pl.BlockSpec((E, 1), lambda b, i: (0, 0)),
                pl.BlockSpec((E, 1), lambda b, i: (0, 0)),
            ],
            out_specs=pl.BlockSpec((None, E, tile), lambda b, i: (b, 0, i)),
        ),
        compiler_params=pltpu.CompilerParams(
            dimension_semantics=("parallel", "parallel"),
            vmem_limit_bytes=int(min(vmem_est(tile) + (12 << 20), 56 << 20)),
            # Let XLA fuse the patch-extract transpose into the first operand.
            allow_input_fusion=[True, False, False, False, False],
        ),
        cost_estimate=cost,
    )(patches, w2, b2, g2, be2)

    # (B, E, Npb_pad) -> slice padding -> cheap reshape; no transpose needed.
    return out[:, :, :Npb].reshape(B, E, T, Hp, Wp)


def _reference(x, conv_w, conv_b, ln_gamma, ln_beta, patch_size):
    """Pure-JAX f32 reference mirroring the PyTorch forward (std=False)."""
    B, C, T, H, W = x.shape
    p = patch_size
    Hp, Wp = H // p, W // p
    E = conv_w.shape[0]
    xr = x.reshape(B, C, T, Hp, p, Wp, p)
    xr = jnp.transpose(xr, (0, 2, 3, 5, 1, 4, 6)).reshape(B, T * Hp * Wp, C * p * p)
    proj = jnp.einsum('bnk,ek->bne', xr, conv_w.reshape(E, -1)) + conv_b
    mean = jnp.mean(proj, axis=-1, keepdims=True)
    var = jnp.mean((proj - mean) ** 2, axis=-1, keepdims=True)
    normed = (proj - mean) / jnp.sqrt(var + LN_EPS) * ln_gamma + ln_beta
    return jnp.transpose(normed.reshape(B, T, Hp, Wp, E), (0, 4, 1, 2, 3))


if __name__ == "__main__":
    # Small shapes consistent with PatchEmbed(patch_size=4, in_chans=3,
    # embed_dim=32, std=False) applied to a (B, C, T, H, W) video tensor.
    B, C, T, H, W = 2, 3, 4, 16, 16
    patch = 4
    E = 32

    key = jax.random.PRNGKey(0)
    kx, kw, kb = jax.random.split(key, 3)
    x = jax.random.normal(kx, (B, C, T, H, W), dtype=jnp.float32)
    conv_w = jax.random.normal(kw, (E, C, 1, patch, patch), dtype=jnp.float32) * 0.05
    conv_b = jax.random.normal(kb, (E,), dtype=jnp.float32) * 0.05
    ln_gamma = jnp.ones((E,), dtype=jnp.float32)   # nn.LayerNorm default init
    ln_beta = jnp.zeros((E,), dtype=jnp.float32)

    ref = _reference(x, conv_w, conv_b, ln_gamma, ln_beta, patch)

    # Exact-precision path: f32 matmul operands, tight check vs. reference.
    out_f32 = patch_embed_forward(x, conv_w, conv_b, ln_gamma, ln_beta, patch,
                                  matmul_dtype=jnp.float32)
    out_f32 = jax.block_until_ready(out_f32)
    assert out_f32.shape == (B, E, T, H // patch, W // patch), out_f32.shape
    assert jnp.allclose(out_f32, ref, atol=1e-4, rtol=1e-4), \
        float(jnp.max(jnp.abs(out_f32 - ref)))

    # Fast path: bf16 matmul operands (f32 accumulate + f32 LayerNorm); looser
    # sanity check since operands are rounded to bf16.
    out_bf16 = patch_embed_forward(x, conv_w, conv_b, ln_gamma, ln_beta, patch,
                                   matmul_dtype=jnp.bfloat16)
    out_bf16 = jax.block_until_ready(out_bf16)
    assert out_bf16.shape == (B, E, T, H // patch, W // patch), out_bf16.shape
    assert float(jnp.max(jnp.abs(out_bf16 - ref))) < 0.1

    print("KERNEL_OK")
</pallas_src>

<mosaic_0001>
module attributes {stable_mosaic.version = 11 : i64} {
  func.func @_patch_embed_kernel(%arg0: i32, %arg1: i32, %arg2: memref<1x48x64xf32, #tpu.memory_space<vmem>>, %arg3: memref<32x48xf32, #tpu.memory_space<vmem>>, %arg4: memref<32x1xf32, #tpu.memory_space<vmem>>, %arg5: memref<32x1xf32, #tpu.memory_space<vmem>>, %arg6: memref<32x1xf32, #tpu.memory_space<vmem>>, %arg7: memref<1x32x64xf32, #tpu.memory_space<vmem>>) attributes {dimension_semantics = [#tpu.dimension_semantics<parallel>, #tpu.dimension_semantics<parallel>], iteration_bounds = array<i64: 2, 1>, scalar_prefetch = 0 : i64, scratch_operands = 0 : i64, tpu.core_type = #tpu.core_type<tc>, window_params = [{transform_indices = @transform_0, window_bounds = array<i64: 1, 48, 64>}, {pipeline_mode = #tpu.pipeline_mode<synchronous>, transform_indices = @transform_1, window_bounds = array<i64: 32, 48>}, {pipeline_mode = #tpu.pipeline_mode<synchronous>, transform_indices = @transform_2, window_bounds = array<i64: 32, 1>}, {pipeline_mode = #tpu.pipeline_mode<synchronous>, transform_indices = @transform_3, window_bounds = array<i64: 32, 1>}, {pipeline_mode = #tpu.pipeline_mode<synchronous>, transform_indices = @transform_4, window_bounds = array<i64: 32, 1>}, {transform_indices = @transform_5, window_bounds = array<i64: 1, 32, 64>}]} {
    %c0 = arith.constant 0 : index
    %c0_0 = arith.constant 0 : index
    %0 = vector.load %arg3[%c0, %c0_0] : memref<32x48xf32, #tpu.memory_space<vmem>>, vector<32x48xf32>
    %c0_1 = arith.constant 0 : index
    %c0_2 = arith.constant 0 : index
    %c0_3 = arith.constant 0 : index
    %1 = vector.load %arg2[%c0_1, %c0_2, %c0_3] : memref<1x48x64xf32, #tpu.memory_space<vmem>>, vector<1x48x64xf32>
    %2 = vector.shape_cast %1 : vector<1x48x64xf32> to vector<48x64xf32>
    %cst = arith.constant dense<0.000000e+00> : vector<32x64xf32>
    %3 = tpu.matmul %0, %2, %cst {dimension_numbers = #tpu.dot_dimension_numbers<[1], [0], [0], [1], [0, 0, 1, 1], [], []>} : vector<32x48xf32>, vector<48x64xf32>, vector<32x64xf32> -> vector<32x64xf32>
    %c0_4 = arith.constant 0 : index
    %c0_5 = arith.constant 0 : index
    %4 = vector.load %arg4[%c0_4, %c0_5] : memref<32x1xf32, #tpu.memory_space<vmem>>, vector<32x1xf32>
    %5 = vector.broadcast %4 : vector<32x1xf32> to vector<32x64xf32>
    %6 = arith.addf %3, %5 : vector<32x64xf32>
    %cst_6 = arith.constant dense<0.000000e+00> : vector<64xf32>
    %7 = vector.multi_reduction <add>, %6, %cst_6 [0] : vector<32x64xf32> to vector<64xf32>
    %8 = vector.shape_cast %7 : vector<64xf32> to vector<1x64xf32>
    %cst_7 = arith.constant 3.125000e-02 : f32
    %9 = vector.broadcast %cst_7 : f32 to vector<1x64xf32>
    %10 = arith.mulf %8, %9 : vector<1x64xf32>
    %11 = vector.broadcast %10 : vector<1x64xf32> to vector<32x64xf32>
    %12 = arith.subf %6, %11 : vector<32x64xf32>
    %13 = arith.mulf %12, %12 : vector<32x64xf32>
    %cst_8 = arith.constant dense<0.000000e+00> : vector<64xf32>
    %14 = vector.multi_reduction <add>, %13, %cst_8 [0] : vector<32x64xf32> to vector<64xf32>
    %15 = vector.shape_cast %14 : vector<64xf32> to vector<1x64xf32>
    %cst_9 = arith.constant 3.125000e-02 : f32
    %16 = vector.broadcast %cst_9 : f32 to vector<1x64xf32>
    %17 = arith.mulf %15, %16 : vector<1x64xf32>
    %cst_10 = arith.constant 9.99999974E-6 : f32
    %18 = vector.broadcast %cst_10 : f32 to vector<1x64xf32>
    %19 = arith.addf %17, %18 : vector<1x64xf32>
    %20 = math.rsqrt %19 : vector<1x64xf32>
    %21 = vector.broadcast %20 : vector<1x64xf32> to vector<32x64xf32>
    %22 = arith.mulf %12, %21 : vector<32x64xf32>
    %c0_11 = arith.constant 0 : index
    %c0_12 = arith.constant 0 : index
    %23 = vector.load %arg5[%c0_11, %c0_12] : memref<32x1xf32, #tpu.memory_space<vmem>>, vector<32x1xf32>
    %24 = vector.broadcast %23 : vector<32x1xf32> to vector<32x64xf32>
    %25 = arith.mulf %22, %24 : vector<32x64xf32>
    %c0_13 = arith.constant 0 : index
    %c0_14 = arith.constant 0 : index
    %26 = vector.load %arg6[%c0_13, %c0_14] : memref<32x1xf32, #tpu.memory_space<vmem>>, vector<32x1xf32>
    %27 = vector.broadcast %26 : vector<32x1xf32> to vector<32x64xf32>
    %28 = arith.addf %25, %27 : vector<32x64xf32>
    %c0_15 = arith.constant 0 : index
    %c0_16 = arith.constant 0 : index
    %c0_17 = arith.constant 0 : index
    %29 = vector.load %arg7[%c0_15, %c0_16, %c0_17] : memref<1x32x64xf32, #tpu.memory_space<vmem>>, vector<1x32x64xf32>
    %30 = vector.shape_cast %29 : vector<1x32x64xf32> to vector<32x64xf32>
    %31 = vector.shape_cast %28 : vector<32x64xf32> to vector<1x32x64xf32>
    tpu.vector_store %arg7[%c0_15, %c0_16, %c0_17], %31 {strides = array<i32>} : memref<1x32x64xf32, #tpu.memory_space<vmem>>, vector<1x32x64xf32>,
    return
  }
  func.func @transform_0(%arg0: i32, %arg1: i32) -> (i32, i32, i32) {
    %c0_i32 = arith.constant 0 : i32
    %c0_i32_0 = arith.constant 0 : i32
    return %arg0, %c0_i32, %arg1 : i32, i32, i32
  }
  func.func @transform_1(%arg0: i32, %arg1: i32) -> (i32, i32) {
    %c0_i32 = arith.constant 0 : i32
    %c0_i32_0 = arith.constant 0 : i32
    %c0_i32_1 = arith.constant 0 : i32
    return %c0_i32, %c0_i32_0 : i32, i32
  }
  func.func @transform_2(%arg0: i32, %arg1: i32) -> (i32, i32) {
    %c0_i32 = arith.constant 0 : i32
    %c0_i32_0 = arith.constant 0 : i32
    %c0_i32_1 = arith.constant 0 : i32
    return %c0_i32, %c0_i32_0 : i32, i32
  }
  func.func @transform_3(%arg0: i32, %arg1: i32) -> (i32, i32) {
    %c0_i32 = arith.constant 0 : i32
    %c0_i32_0 = arith.constant 0 : i32
    %c0_i32_1 = arith.constant 0 : i32
    return %c0_i32, %c0_i32_0 : i32, i32
  }
  func.func @transform_4(%arg0: i32, %arg1: i32) -> (i32, i32) {
    %c0_i32 = arith.constant 0 : i32
    %c0_i32_0 = arith.constant 0 : i32
    %c0_i32_1 = arith.constant 0 : i32
    return %c0_i32, %c0_i32_0 : i32, i32
  }
  func.func @transform_5(%arg0: i32, %arg1: i32) -> (i32, i32, i32) {
    %c0_i32 = arith.constant 0 : i32
    %c0_i32_0 = arith.constant 0 : i32
    return %arg0, %c0_i32, %arg1 : i32, i32, i32
  }
}

</mosaic_0001>

<llo_original>
// kernel: tpu_custom_call.1
$region0: #{tpu_custom_call.1}
  #allocation0 [shape = 'u32[]', space=smem, size = 0x4, offset = 0x4, fixed_abs, tag = 'smem constant byte address 0x4 - core index']
  #allocation1 [shape = 'u32[144,128]{1,0:T(1,128)}', space=vmem, size = 0x12000, scoped, tag = 'internal scratch']
  %s0 = inlined_call_operand.vmem [shape: f32[2,48,64], index: 0, kind: input, shape index: {}]
  %s1 = inlined_call_operand.hbm [shape: f32[32,48], index: 1, kind: input, shape index: {}]
  %s2 = inlined_call_operand.vmem [shape: f32[32,1], index: 2, kind: input, shape index: {}]
  %s3 = inlined_call_operand.vmem [shape: f32[32,1], index: 3, kind: input, shape index: {}]
  %s4 = inlined_call_operand.vmem [shape: f32[32,1], index: 4, kind: input, shape index: {}]
  %s5 = inlined_call_operand.hbm [shape: f32[2,32,64], index: 5, kind: output, shape index: {}]
  %s6 = sld [smem:[#allocation0]]
  $region57: #{tpu_custom_call.1} parent=0
    _
  %s8 = ssub.s32 1, %s6
  %s9 = scalar_select 0, %s8, %s6
  $region1: #{tpu_custom_call.1} parent=0
    #allocation2 [shape = 'u8[16384]{0}', space=vmem, size = 0x4000, scoped, tag = 'input window, operand 1, single buffered']
    #allocation3 [shape = 's32[2]{0}', space=sflag, size = 0x8, scoped, tag = 'scoped memory for tpu_custom_call.1']
    #allocation4 [shape = 's32[2]{0}', space=sflag, size = 0x8, scoped, tag = 'scoped memory for tpu_custom_call.1']
    #allocation5 [shape = 'u8[32768]{0}', space=vmem, size = 0x8000, scoped, tag = 'output window, operand 0']
    %10 = vsyncpa [#allocation3], 0
    %11 = vsyncpa [#allocation4], 0
    %s12 = scalar_lea.sflag [#allocation4], 1
    %13 = vsyncpa %s12, 0
    loop: start=0, step=1, limit=4
    $region2: #{tpu_custom_call.1} parent=1 // loop_pre_header
      _
    $region3: #{tpu_custom_call.1} parent=1 // loop_header
      %s15 = sphi 0, %s19
      %p16 = scmp.ge.s32.totalorder %s15, 4
      %s22 = sphi 0, %s34
      %s23 = sphi 0, %s30
      %s24 = sphi 0, %s22
      %s25 = sphi 0, %s23
      %s26 = sphi 0, %s24
      %s27 = sphi 0, %s25
      %s39 = sphi 0, %s41
      %s42 = sphi 0, %s39
      %s43 = sphi 0, %s42
      %s59 = sphi 0, %s43
      %s63 = sphi 0, %s63
      %s65 = sphi 0, %s63
      %s66 = sphi 0, %s65
      %s80 = sphi 0, %s66
      %s84 = sphi 0, %s84
      %s86 = sphi 0, %s84
      %s87 = sphi 0, %s86
      %s101 = sphi 0, %s87
      %s105 = sphi 0, %s105
      %s107 = sphi 0, %s105
      %s108 = sphi 0, %s107
      %s122 = sphi 0, %s108
      %s126 = sphi 0, %s126
      %s128 = sphi 0, %s126
      %s129 = sphi 0, %s128
      %s143 = sphi 0, %s129
      %s151 = sphi 0, %s153
      %s154 = sphi 0, %s151
      %s155 = sphi 0, %s154
      %s171 = sphi 0, %s155
    $region4: #{tpu_custom_call.1} parent=1 // loop_header_branch
      %18 = sbr.rel (%p16) target = $region8
    $region5: #{tpu_custom_call.1} parent=1 // loop_body
      %s20 = ssub.s32 %s15, 1
      %s21 = ssub.s32 %s15, 2
      %s28 = sadd.s32 1, %s23
      %p29 = scmp.ge.s32.totalorder %s28, 1
      %s30 = scalar_select %p29, 0, %s28
      %s31 = sadd.s32 1, %s22
      %s32 = scalar_select %p29, %s31, %s22
      %p33 = scmp.ge.s32.totalorder %s32, 2
      %s34 = scalar_select %p33, 0, %s32
      %s35 = ssub.s32 %s22, %s34
      %s36 = ssub.s32 %s23, %s30
      %s37 = sor.u32 %s35, %s36
      %p38 = scmp.eq.s32.totalorder %s37, 0
      %s40 = sadd.s32 %s39, 1
      %s41 = scalar_select %p38, %s39, %s40
      %p44 = pneg %p38
      %p45 = scmp.eq.s32.totalorder %s15, 1
      %p46 = por %p44, %p45
      %p47 = scmp.ne.s32.totalorder %s39, %s42
      %p48 = scmp.eq.s32.totalorder %s15, 0
      %p49 = por %p47, %p48
      %p50 = scmp.ne.s32.totalorder %s39, %s42
      %p51 = scmp.eq.s32.totalorder %s20, 1
      %p52 = por %p50, %p51
      %p53 = scmp.ne.s32.totalorder %s42, %s43
      %p54 = scmp.eq.s32.totalorder %s20, 0
      %p55 = por %p53, %p54
      %p56 = scmp.ne.s32.totalorder %s42, %s43
      %p57 = scmp.eq.s32.totalorder %s21, 1
      %p58 = por %p56, %p57
      %p60 = scmp.ne.s32.totalorder %s43, %s59
      %p61 = scmp.eq.s32.totalorder %s21, 0
      %p62 = por %p60, %p61
      %s64 = sadd.s32 %s63, 1
      %p67 = scmp.eq.s32.totalorder %s15, 1
      %p68 = scmp.ne.s32.totalorder %s63, %s65
      %p69 = scmp.eq.s32.totalorder %s15, 0
      %p70 = por %p68, %p69
      %p71 = scmp.ne.s32.totalorder %s63, %s65
      %p72 = scmp.eq.s32.totalorder %s20, 1
      %p73 = por %p71, %p72
      %p74 = scmp.ne.s32.totalorder %s65, %s66
      %p75 = scmp.eq.s32.totalorder %s20, 0
      %p76 = por %p74, %p75
      %p77 = scmp.ne.s32.totalorder %s65, %s66
      %p78 = scmp.eq.s32.totalorder %s21, 1
      %p79 = por %p77, %p78
      %p81 = scmp.ne.s32.totalorder %s66, %s80
      %p82 = scmp.eq.s32.totalorder %s21, 0
      %p83 = por %p81, %p82
      %s85 = sadd.s32 %s84, 1
      %p88 = scmp.eq.s32.totalorder %s15, 1
      %p89 = scmp.ne.s32.totalorder %s84, %s86
      %p90 = scmp.eq.s32.totalorder %s15, 0
      %p91 = por %p89, %p90
      %p92 = scmp.ne.s32.totalorder %s84, %s86
      %p93 = scmp.eq.s32.totalorder %s20, 1
      %p94 = por %p92, %p93
      %p95 = scmp.ne.s32.totalorder %s86, %s87
      %p96 = scmp.eq.s32.totalorder %s20, 0
      %p97 = por %p95, %p96
      %p98 = scmp.ne.s32.totalorder %s86, %s87
      %p99 = scmp.eq.s32.totalorder %s21, 1
      %p100 = por %p98, %p99
      %p102 = scmp.ne.s32.totalorder %s87, %s101
      %p103 = scmp.eq.s32.totalorder %s21, 0
      %p104 = por %p102, %p103
      %s106 = sadd.s32 %s105, 1
      %p109 = scmp.eq.s32.totalorder %s15, 1
      %p110 = scmp.ne.s32.totalorder %s105, %s107
      %p111 = scmp.eq.s32.totalorder %s15, 0
      %p112 = por %p110, %p111
      %p113 = scmp.ne.s32.totalorder %s105, %s107
      %p114 = scmp.eq.s32.totalorder %s20, 1
      %p115 = por %p113, %p114
      %p116 = scmp.ne.s32.totalorder %s107, %s108
      %p117 = scmp.eq.s32.totalorder %s20, 0
      %p118 = por %p116, %p117
      %p119 = scmp.ne.s32.totalorder %s107, %s108
      %p120 = scmp.eq.s32.totalorder %s21, 1
      %p121 = por %p119, %p120
      %p123 = scmp.ne.s32.totalorder %s108, %s122
      %p124 = scmp.eq.s32.totalorder %s21, 0
      %p125 = por %p123, %p124
      %s127 = sadd.s32 %s126, 1
      %p130 = scmp.eq.s32.totalorder %s15, 1
      %p131 = scmp.ne.s32.totalorder %s126, %s128
      %p132 = scmp.eq.s32.totalorder %s15, 0
      %p133 = por %p131, %p132
      %p134 = scmp.ne.s32.totalorder %s126, %s128
      %p135 = scmp.eq.s32.totalorder %s20, 1
      %p136 = por %p134, %p135
      %p137 = scmp.ne.s32.totalorder %s128, %s129
      %p138 = scmp.eq.s32.totalorder %s20, 0
      %p139 = por %p137, %p138
      %p140 = scmp.ne.s32.totalorder %s128, %s129
      %p141 = scmp.eq.s32.totalorder %s21, 1
      %p142 = por %p140, %p141
      %p144 = scmp.ne.s32.totalorder %s129, %s143
      %p145 = scmp.eq.s32.totalorder %s21, 0
      %p146 = por %p144, %p145
      %s147 = ssub.s32 %s22, %s34
      %s148 = ssub.s32 %s23, %s30
      %s149 = sor.u32 %s147, %s148
      %p150 = scmp.eq.s32.totalorder %s149, 0
      %s152 = sadd.s32 %s151, 1
      %s153 = scalar_select %p150, %s151, %s152
      %p156 = pneg %p150
      %p157 = scmp.eq.s32.totalorder %s15, 1
      %p158 = por %p156, %p157
      %p159 = scmp.ne.s32.totalorder %s151, %s154
      %p160 = scmp.eq.s32.totalorder %s15, 0
      %p161 = por %p159, %p160
      %p162 = scmp.ne.s32.totalorder %s151, %s154
      %p163 = scmp.eq.s32.totalorder %s20, 1
      %p164 = por %p162, %p163
      %p165 = scmp.ne.s32.totalorder %s154, %s155
      %p166 = scmp.eq.s32.totalorder %s20, 0
      %p167 = por %p165, %p166
      %p168 = scmp.ne.s32.totalorder %s154, %s155
      %p169 = scmp.eq.s32.totalorder %s21, 1
      %p170 = por %p168, %p169
      %p172 = scmp.ne.s32.totalorder %s155, %s171
      %p173 = scmp.eq.s32.totalorder %s21, 0
      %p174 = por %p172, %p173
      %p175 = scmp.le.s32.totalorder 1, %s15
      %p176 = scmp.lt.s32.totalorder %s15, 3
      %p177 = pnand %p175, %p176
      %p178 = pneg %p177
      // Predicated region
      $region9: #{tpu_custom_call.1} parent=5 // pred_check
        _
      $region10: #{tpu_custom_call.1} parent=5 // pred_check_branch
        %180 = sbr.rel (%p177) target = $region12
      $region11: #{tpu_custom_call.1} parent=5 // pred_region
        %s181 = ssub.s32 %s15, 1
        // Predicated region
        $region13: #{tpu_custom_call.1} parent=11 // pred_check
          %p182 = pneg %p76
        $region14: #{tpu_custom_call.1} parent=11 // pred_check_branch
          %184 = sbr.rel (%p182) target = $region16
        $region15: #{tpu_custom_call.1} parent=11 // pred_region
          %s186 = ssub.s32 512, 512
          %187 = vsyncadd [#allocation3], %s186
          %s188 = sshll.u32 [#allocation2], 4
          %s189 = int_to_ptr.vmem [resolvable:$true] %s188
          %194 = dma.hbm_to_vmem [thread:$0]  %s1, 512, %s189, [#allocation3], 128, 128, 8
        $region16: #{tpu_custom_call.1} parent=11 // pred_fallthru
          _
        // Predicated region
        $region17: #{tpu_custom_call.1} parent=11 // pred_check
          %p195 = pneg %p97
        $region18: #{tpu_custom_call.1} parent=11 // pred_check_branch
          %197 = sbr.rel (%p195) target = $region20
        $region19: #{tpu_custom_call.1} parent=11 // pred_region
          _
        $region20: #{tpu_custom_call.1} parent=11 // pred_fallthru
          _
        // Predicated region
        $region21: #{tpu_custom_call.1} parent=11 // pred_check
          %p198 = pneg %p118
        $region22: #{tpu_custom_call.1} parent=11 // pred_check_branch
          %200 = sbr.rel (%p198) target = $region24
        $region23: #{tpu_custom_call.1} parent=11 // pred_region
          _
        $region24: #{tpu_custom_call.1} parent=11 // pred_fallthru
          _
        // Predicated region
        $region25: #{tpu_custom_call.1} parent=11 // pred_check
          %p201 = pneg %p139
        $region26: #{tpu_custom_call.1} parent=11 // pred_check_branch
          %203 = sbr.rel (%p201) target = $region28
        $region27: #{tpu_custom_call.1} parent=11 // pred_region
          _
        $region28: #{tpu_custom_call.1} parent=11 // pred_fallthru
          _
      $region12: #{tpu_custom_call.1} parent=5 // pred_fallthru
        _
      %p204 = scmp.lt.s32.totalorder %s15, 2
      // Predicated region
      $region29: #{tpu_custom_call.1} parent=5 // pred_check
        %p205 = pneg %p204
      $region30: #{tpu_custom_call.1} parent=5 // pred_check_branch
        %207 = sbr.rel (%p205) target = $region32
      $region31: #{tpu_custom_call.1} parent=5 // pred_region
        // Predicated region
        $region33: #{tpu_custom_call.1} parent=31 // pred_check
          %p208 = pneg %p49
        $region34: #{tpu_custom_call.1} parent=31 // pred_check_branch
          %210 = sbr.rel (%p208) target = $region36
        $region35: #{tpu_custom_call.1} parent=31 // pred_region
          %p211 = scmp.lt.s32.totalorder %s22, 1
          %s212 = scalar_select %p211, %s22, 1
          %p213 = scmp.lt.s32.totalorder %s23, 0
          %s214 = scalar_select %p213, %s23, 0
          %s215 = smul.addr %s212, 6
          %s216 = sadd.s32 %s214, %s215
          %s217 = smul.addr %s216, 8
          %s218 = scalar_lea.vmem %s0, %s217
        $region36: #{tpu_custom_call.1} parent=31 // pred_fallthru
          _
      $region32: #{tpu_custom_call.1} parent=5 // pred_fallthru
        _
      %p219 = scmp.le.s32.totalorder 1, %s15
      %p220 = scmp.lt.s32.totalorder %s15, 3
      %p221 = pnand %p219, %p220
      %p222 = pneg %p221
      // Predicated region
      $region37: #{tpu_custom_call.1} parent=5 // pred_check
        _
      $region38: #{tpu_custom_call.1} parent=5 // pred_check_branch
        %224 = sbr.rel (%p221) target = $region40
      $region39: #{tpu_custom_call.1} parent=5 // pred_region
        %s225 = ssub.s32 %s15, 1
        // Predicated region
        $region41: #{tpu_custom_call.1} parent=39 // pred_check
          %p226 = pneg %p76
        $region42: #{tpu_custom_call.1} parent=39 // pred_check_branch
          %228 = sbr.rel (%p226) target = $region44
        $region43: #{tpu_custom_call.1} parent=39 // pred_region
          %229 = dma.done [#allocation3], 512
        $region44: #{tpu_custom_call.1} parent=39 // pred_fallthru
          _
        %p230 = scmp.lt.s32.totalorder %s24, 1
        %s231 = scalar_select %p230, %s24, 1
        %p232 = scmp.lt.s32.totalorder %s25, 0
        %s233 = scalar_select %p232, %s25, 0
        %s234 = smul.addr %s231, 6
        %s235 = sadd.s32 %s233, %s234
        %s236 = smul.addr %s235, 8
        %s237 = scalar_lea.vmem %s0, %s236
        %p238 = pneg %p55
        %p239 = pneg %p52
        %p240 = pneg %p76
        %p241 = pneg %p73
        %p242 = pneg %p97
        %p243 = pneg %p94
        %p244 = pneg %p118
        %p245 = pneg %p115
        %p246 = pneg %p139
        %p247 = pneg %p136
        %p248 = pneg %p167
        %p249 = pneg %p164
        %s250 = sand.u32 %s154, 1
        %s251 = scalar_lea.sflag [#allocation4], %s250
        %s252 = sand.u32 %s154, 1
        %s253 = smul.addr %s252, 32
        %s254 = scalar_lea.vmem [#allocation5], %s253
        %p255 = scmp.lt.s32.totalorder %s24, 1
        %s256 = scalar_select %p255, %s24, 1
        %p257 = scmp.lt.s32.totalorder %s25, 0
        %s258 = scalar_select %p257, %s25, 0
        %s259 = smul.addr %s256, 6
        %s260 = sadd.s32 %s258, %s259
        %s261 = smul.addr %s260, 8
        %s262 = scalar_lea.vmem %s0, %s261
        %v263 = vld [vmem:[#allocation2] sm:$0xff]
        %v264 = vld [vmem:[#allocation2 + $0x8] sm:$0xff]
        %v265 = vld [vmem:[#allocation2 + $0x10] sm:$0xff]
        %v266 = vld [vmem:[#allocation2 + $0x18] sm:$0xff]
        %v267 = vld [vmem:[%s262] sm:$0xff]
        %v268 = vld [vmem:[%s262 + $0x8] sm:$0xff]
        %v269 = vld [vmem:[%s262 + $0x10] sm:$0xff]
        %v270 = vld [vmem:[%s262 + $0x18] sm:$0xff]
        %v271 = vld [vmem:[%s262 + $0x20] sm:$0xff]
        %v272 = vld [vmem:[%s262 + $0x28] sm:$0xff]
        %v273 = vld [vmem:[%s2] sm:$0xff]
        %v274 = vld [vmem:[%s2 + $0x8] sm:$0xff]
        %v275 = vld [vmem:[%s2 + $0x10] sm:$0xff]
        %v276 = vld [vmem:[%s2 + $0x18] sm:$0xff]
        %278 = vset.pattern.permute.xlu0 0
        %279 = vperm.xlu0 %278, %v273
        %v280 = vpop.permute.xlu0 %279
        %283 = vset.pattern.permute.xlu0 0
        %284 = vperm.xlu0 %283, %v274
        %v285 = vpop.permute.xlu0 %284
        %288 = vset.pattern.permute.xlu0 0
        %289 = vperm.xlu0 %288, %v275
        %v290 = vpop.permute.xlu0 %289
        %293 = vset.pattern.permute.xlu0 0
        %294 = vperm.xlu0 %293, %v276
        %v295 = vpop.permute.xlu0 %294
        %vm297 = vcmask 392192
        %v299 = vsel %vm297, %v263, 0
        %v302 = vsel %vm297, %v264, 0
        %v305 = vsel %vm297, %v265, 0
        %v308 = vsel %vm297, %v266, 0
        %310 = vmatprep.subr.mxu0 0.0
        %311 = vmatpush1.msra.mxu0 %v267
        %312 = vmatprep.subr.mxu0 0.0
        %313 = vmatpush1.msra.mxu0 %v268
        %314 = vmatprep.subr.mxu0 0.0
        %315 = vmatpush1.msra.mxu0 %v269
        %316 = vmatprep.subr.mxu0 0.0
        %317 = vmatpush1.msra.mxu0 %v270
        %318 = vmatprep.subr.mxu0 0.0
        %319 = vmatpush1.msra.mxu0 %v271
        %320 = vmatprep.subr.mxu0 0.0
        %321 = vmatpush1.msra.mxu0 %v272
        %322 = vmatprep.subr.mxu0 0.0
        %323 = vmatpush1.msra.mxu0 0.0
        %324 = vmatprep.subr.mxu0 0.0
        %325 = vmatpush1.msra.mxu0 0.0
        %326 = vmatprep.subr.mxu0 0.0
        %327 = vmatpush1.msra.mxu0 0.0
        %328 = vmatprep.subr.mxu0 0.0
        %329 = vmatpush1.msra.mxu0 0.0
        %330 = vmatprep.subr.mxu0 0.0
        %331 = vmatpush1.msra.mxu0 0.0
        %332 = vmatprep.subr.mxu0 0.0
        %333 = vmatpush1.msra.mxu0 0.0
        %334 = vmatprep.subr.mxu0 0.0
        %335 = vmatpush1.msra.mxu0 0.0
        %336 = vmatprep.subr.mxu0 0.0
        %337 = vmatpush1.msra.mxu0 0.0
        %338 = vmatprep.subr.mxu0 0.0
        %339 = vmatpush1.msra.mxu0 0.0
        %340 = vmatprep.subr.mxu0 0.0
        %341 = vmatpush1.msra.mxu0 0.0
        %342 = vmatprep.subr.mxu0 0.0
        %343 = vmatpush1.msra.mxu0 0.0
        %344 = vmatprep.subr.mxu0 0.0
        %345 = vmatpush1.msra.mxu0 0.0
        %346 = vmatprep.subr.mxu0 0.0
        %347 = vmatpush1.msra.mxu0 0.0
        %348 = vmatprep.subr.mxu0 0.0
        %349 = vmatpush1.msra.mxu0 0.0
        %350 = vmatprep.subr.mxu0 0.0
        %351 = vmatpush1.msra.mxu0 0.0
        %352 = vmatprep.subr.mxu0 0.0
        %353 = vmatpush1.msra.mxu0 0.0
        %354 = vmatprep.subr.mxu0 0.0
        %355 = vmatpush1.msra.mxu0 0.0
        %356 = vmatprep.subr.mxu0 0.0
        %357 = vmatpush1.msra.mxu0 0.0
        %358 = vmatprep.subr.mxu0 0.0
        %359 = vmatpush1.msra.mxu0 0.0
        %360 = vmatprep.subr.mxu0 0.0
        %361 = vmatpush1.msra.mxu0 0.0
        %362 = vmatprep.subr.mxu0 0.0
        %363 = vmatpush1.msra.mxu0 0.0
        %364 = vmatprep.subr.mxu0 0.0
        %365 = vmatpush1.msra.mxu0 0.0
        %366 = vmatprep.subr.mxu0 0.0
        %367 = vmatpush1.msra.mxu0 0.0
        %368 = vmatprep.subr.mxu0 0.0
        %369 = vmatpush1.msra.mxu0 0.0
        %370 = vmatprep.subr.mxu0 0.0
        %371 = vmatpush1.msra.mxu0 0.0
        %372 = vmatprep.subr.mxu0 0.0
        %373 = vmatpush1.msra.mxu0 0.0
        %374 = vmatprep.mubr.f32.mxu0 0.0
        %375 = vmatmul.mubr.f32.gmra.mrb[0].mxu0 %v299
        %v376 = vpop.f32.mrb[0].mxu0
        %v377 = vadd.f32 %v280, %v376
        %v378 = vpop.f32.mrb[0].mxu0
        %379 = vmatprep.mubr.f32.mxu0 0.0
        %380 = vmatmul.mubr.f32.gmra.mrb[0].mxu0 %v302
        %v381 = vpop.f32.mrb[0].mxu0
        %v382 = vadd.f32 %v285, %v381
        %v383 = vpop.f32.mrb[0].mxu0
        %384 = vmatprep.mubr.f32.mxu0 0.0
        %385 = vmatmul.mubr.f32.gmra.mrb[0].mxu0 %v305
        %v386 = vpop.f32.mrb[0].mxu0
        %v387 = vadd.f32 %v290, %v386
        %v388 = vpop.f32.mrb[0].mxu0
        %389 = vmatprep.mubr.f32.mxu0 0.0
        %390 = vmatmul.mubr.f32.gmra.mrb[0].mxu0 %v308
        %v391 = vpop.f32.mrb[0].mxu0
        %v392 = vadd.f32 %v295, %v391
        %v393 = vpop.f32.mrb[0].mxu0
        %394 = vdwg.mxu0
        %vm395 = vcmask 523264
        %v396 = vsel %vm395, %v377, 0.0
        %v397 = vsel %vm395, %v382, 0.0
        %v398 = vadd.f32 %v396, %v397
        %v399 = vsel %vm395, %v387, 0.0
        %v400 = vadd.f32 %v398, %v399
        %v401 = vsel %vm395, %v392, 0.0
        %v402 = vadd.f32 %v400, %v401
        %v403 = vrot.slane %v402, 4
        %v404 = vadd.f32 %v402, %v403
        %v405 = vrot.slane %v404, 2
        %v406 = vadd.f32 %v404, %v405
        %v407 = vrot.slane %v406, 1
        %v408 = vadd.f32 %v406, %v407
        %v409 = vmul.f32 %v408, 0.03125
        %v410 = vsub.f32 %v377, %v409
        %v411 = vsub.f32 %v382, %v409
        %v412 = vsub.f32 %v387, %v409
        %v413 = vsub.f32 %v392, %v409
        %v414 = vmul.f32 %v410, %v410
        %v415 = vmul.f32 %v411, %v411
        %v416 = vmul.f32 %v412, %v412
        %v417 = vmul.f32 %v413, %v413
        %v418 = vsel %vm395, %v414, 0.0
        %v419 = vsel %vm395, %v415, 0.0
        %v420 = vadd.f32 %v418, %v419
        %v421 = vsel %vm395, %v416, 0.0
        %v422 = vadd.f32 %v420, %v421
        %v423 = vsel %vm395, %v417, 0.0
        %v424 = vadd.f32 %v422, %v423
        %v425 = vrot.slane %v424, 4
        %v426 = vadd.f32 %v424, %v425
        %v427 = vrot.slane %v426, 2
        %v428 = vadd.f32 %v426, %v427
        %v429 = vrot.slane %v428, 1
        %v430 = vadd.f32 %v428, %v429
        %v431 = vmul.f32 %v430, 0.03125
        %v432 = vadd.f32 %v431, 1e-05
        %v433 = vrsqrt.pop %v432
        %v434 = vmul.f32 %v410, %v433
        %v435 = vmul.f32 %v411, %v433
        %v436 = vmul.f32 %v412, %v433
        %v437 = vmul.f32 %v413, %v433
        %v438 = vld [vmem:[%s3] sm:$0xff]
        %v439 = vld [vmem:[%s3 + $0x8] sm:$0xff]
        %v440 = vld [vmem:[%s3 + $0x10] sm:$0xff]
        %v441 = vld [vmem:[%s3 + $0x18] sm:$0xff]
        %443 = vset.pattern.permute.xlu0 0
        %444 = vperm.xlu0 %443, %v438
        %v445 = vpop.permute.xlu0 %444
        %448 = vset.pattern.permute.xlu0 0
        %449 = vperm.xlu0 %448, %v439
        %v450 = vpop.permute.xlu0 %449
        %453 = vset.pattern.permute.xlu0 0
        %454 = vperm.xlu0 %453, %v440
        %v455 = vpop.permute.xlu0 %454
        %458 = vset.pattern.permute.xlu0 0
        %459 = vperm.xlu0 %458, %v441
        %v460 = vpop.permute.xlu0 %459
        %v462 = vmul.f32 %v434, %v445
        %v463 = vmul.f32 %v435, %v450
        %v464 = vmul.f32 %v436, %v455
        %v465 = vmul.f32 %v437, %v460
        %v466 = vld [vmem:[%s4] sm:$0xff]
        %v467 = vld [vmem:[%s4 + $0x8] sm:$0xff]
        %v468 = vld [vmem:[%s4 + $0x10] sm:$0xff]
        %v469 = vld [vmem:[%s4 + $0x18] sm:$0xff]
        %471 = vset.pattern.permute.xlu0 0
        %472 = vperm.xlu0 %471, %v466
        %v473 = vpop.permute.xlu0 %472
        %476 = vset.pattern.permute.xlu0 0
        %477 = vperm.xlu0 %476, %v467
        %v478 = vpop.permute.xlu0 %477
        %481 = vset.pattern.permute.xlu0 0
        %482 = vperm.xlu0 %481, %v468
        %v483 = vpop.permute.xlu0 %482
        %486 = vset.pattern.permute.xlu0 0
        %487 = vperm.xlu0 %486, %v469
        %v488 = vpop.permute.xlu0 %487
        %v490 = vadd.f32 %v462, %v473
        %v491 = vadd.f32 %v463, %v478
        %v492 = vadd.f32 %v464, %v483
        %v493 = vadd.f32 %v465, %v488
        %494 = vst.msk [vmem:[%s254] sm:$0xff] %vm395, %v490
        %495 = vst.msk [vmem:[%s254 + $0x8] sm:$0xff] %vm395, %v491
        %496 = vst.msk [vmem:[%s254 + $0x10] sm:$0xff] %vm395, %v492
        %497 = vst.msk [vmem:[%s254 + $0x18] sm:$0xff] %vm395, %v493
        %s498 = sand.u32 %s154, 1
        %s499 = scalar_lea.sflag [#allocation4], %s498
        %s500 = sand.u32 %s154, 1
        %s501 = smul.addr %s500, 32
        %s502 = scalar_lea.vmem [#allocation5], %s501
        // Predicated region
        $region45: #{tpu_custom_call.1} parent=39 // pred_check
          %p503 = pneg %p164
        $region46: #{tpu_custom_call.1} parent=39 // pred_check_branch
          %505 = sbr.rel (%p503) target = $region48
        $region47: #{tpu_custom_call.1} parent=39 // pred_region
          %s507 = ssub.s32 512, 512
          %508 = vsyncadd %s499, %s507
          %s509 = smul.addr %s24, 4
          %s510 = sadd.s32 %s25, %s509
          %s511 = smul.addr %s510, 128
          %s512 = scalar_lea.hbm %s5, %s511
          %s513 = sshll.u32 %s502, 4
          %s514 = int_to_ptr.vmem [resolvable:$true] %s513
          %519 = dma.vmem_to_hbm [thread:$0]  %s514, 512, %s512, %s499, 128, 128, 8
        $region48: #{tpu_custom_call.1} parent=39 // pred_fallthru
          _
      $region40: #{tpu_custom_call.1} parent=5 // pred_fallthru
        _
      %p520 = scmp.le.s32.totalorder 2, %s15
      // Predicated region
      $region49: #{tpu_custom_call.1} parent=5 // pred_check
        %p521 = pneg %p520
      $region50: #{tpu_custom_call.1} parent=5 // pred_check_branch
        %523 = sbr.rel (%p521) target = $region52
      $region51: #{tpu_custom_call.1} parent=5 // pred_region
        %s524 = ssub.s32 %s15, 2
        // Predicated region
        $region53: #{tpu_custom_call.1} parent=51 // pred_check
          %p525 = pneg %p170
        $region54: #{tpu_custom_call.1} parent=51 // pred_check_branch
          %527 = sbr.rel (%p525) target = $region56
        $region55: #{tpu_custom_call.1} parent=51 // pred_region
          %s528 = sand.u32 %s155, 1
          %s529 = scalar_lea.sflag [#allocation4], %s528
          %s530 = sand.u32 %s155, 1
          %s531 = smul.addr %s530, 32
          %s532 = scalar_lea.vmem [#allocation5], %s531
          %533 = dma.done %s529, 512
        $region56: #{tpu_custom_call.1} parent=51 // pred_fallthru
          _
      $region52: #{tpu_custom_call.1} parent=5 // pred_fallthru
        _
    $region6: #{tpu_custom_call.1} parent=1 // loop_footer
      %s19 = sadd.s32 1, %s15
    $region7: #{tpu_custom_call.1} parent=1 // loop_footer_branch
      %14 = sbr.rel target = $region3
    $region8: #{tpu_custom_call.1} parent=1 // loop_exit
      _
    %534 = vsyncpa [#allocation3], 1
    %s535 = scalar_lea.sflag [#allocation3], 1
    %536 = vsyncpa %s535, 1
    %537 = vsyncpa [#allocation4], 1
    %s538 = scalar_lea.sflag [#allocation4], 1
    %539 = vsyncpa %s538, 1

</llo_original>
